<compile_context>
chip_gen: v7x
topology: tpu7x:2x2x1
jax: 0.10.0
libtpu: 0.0.40
codegen_flags: <defaults>
</compile_context>

<pallas_src>
import functools

import jax
import jax.numpy as jnp
from jax.experimental import pallas as pl
from jax.experimental.pallas import tpu as pltpu


# --------------------------------------------------------------------------------------
# Kernel
# --------------------------------------------------------------------------------------
def _dattn_core(x_ref, w1_ref, w2_ref):
    """Shared body. x_ref: (NB, L, C); w1_ref: (C, Dh); w2_ref: (1, Dh)."""
    NB, L, C = x_ref.shape
    Dh = w1_ref.shape[1]

    x = x_ref[...]                                      # (NB, L, C), MXU dtype (bf16)
    xf = x.astype(jnp.float32)                          # f32 copy for the weighted sum

    # First linear + ReLU: one large MXU matmul over all NB*L rows, f32 accumulate.
    h = jnp.dot(x.reshape(NB * L, C), w1_ref[...],
                preferred_element_type=jnp.float32)     # (NB*L, Dh) f32
    h = jnp.maximum(h, 0.0).reshape(NB, L, Dh)

    # Second linear (Dh -> 1): VPU broadcast-multiply + XLU lane reduce (avoid M=1 MXU op).
    w2 = w2_ref[...].astype(jnp.float32)                # (1, Dh)
    scores = jnp.sum(h * w2, axis=-1)                   # (NB, L), lane-dense in L

    # Softmax over the sequence axis (f32).
    m = jnp.max(scores, axis=-1, keepdims=True)
    e = jnp.exp(scores - m)
    denom = jnp.sum(e, axis=-1, keepdims=True)
    p = e * pl.reciprocal(denom, approx=True)           # (NB, L)

    # Attention-weighted sum over the sequence: VPU multiply + sublane reduce (no M=1 MXU).
    out = jnp.sum(p[:, :, None] * xf, axis=1)           # (NB, C) f32
    return p, out


def _dattn_kernel_out(x_ref, w1_ref, w2_ref, out_ref):
    _, out = _dattn_core(x_ref, w1_ref, w2_ref)
    out_ref[...] = out.astype(out_ref.dtype)


def _dattn_kernel_out_attn(x_ref, w1_ref, w2_ref, out_ref, attn_ref):
    p, out = _dattn_core(x_ref, w1_ref, w2_ref)
    out_ref[...] = out.astype(out_ref.dtype)
    attn_ref[...] = p.astype(attn_ref.dtype)


# --------------------------------------------------------------------------------------
# Wrapper
# --------------------------------------------------------------------------------------
def _pick_batch_tile(N):
    """Batch rows per grid step: full batch if tiny, else a multiple of 8 up to 32."""
    if N <= 8:
        return N
    nb = 8
    while nb * 2 <= 32 and nb * 2 <= N:
        nb *= 2
    return nb


@functools.partial(jax.jit, static_argnames=("return_attn", "mxu_dtype", "block_n"))
def dattention_forward(x, w1, w2, return_attn=False, mxu_dtype=jnp.bfloat16, block_n=None):
    """x: [N, L, C] f32. w1: [C, Dh]. w2: [1, Dh]. Returns [N, C] (and [N, L] attn)."""
    N, L, C = x.shape
    Dh = w1.shape[1]

    NB = block_n if block_n is not None else _pick_batch_tile(N)
    n_blocks = pl.cdiv(N, NB)
    Npad = NB * n_blocks
    if Npad != N:
        # Zero padding is numerically safe: padded rows softmax to uniform, output zeros,
        # and are sliced away below; no cross-row coupling exists in this attention.
        x = jnp.pad(x, ((0, Npad - N), (0, 0), (0, 0)))

    # bf16 MXU operands (halves x HBM traffic); softmax / reductions stay f32 in-kernel.
    x_in = x.astype(mxu_dtype)
    w1_in = w1.astype(mxu_dtype)
    w2_in = w2.astype(jnp.float32)

    itemsize = jnp.dtype(mxu_dtype).itemsize
    out_bytes = Npad * C * 4 + (Npad * L * 4 if return_attn else 0)
    cost = pl.CostEstimate(
        flops=2 * Npad * L * C * Dh + 2 * Npad * L * Dh + 2 * Npad * L * C,
        transcendentals=Npad * L,
        bytes_accessed=Npad * L * C * itemsize + C * Dh * itemsize + Dh * 4 + out_bytes,
    )

    in_specs = [
        pl.BlockSpec((NB, L, C), lambda b: (b, 0, 0)),
        pl.BlockSpec((C, Dh), lambda b: (0, 0)),
        pl.BlockSpec((1, Dh), lambda b: (0, 0)),
    ]
    compiler_params = pltpu.CompilerParams(dimension_semantics=("parallel",))

    # TODO(synk): for very long L, add a second ("arbitrary") sequence-tile grid axis with
    # an online-softmax accumulator so VMEM stays bounded; not needed at these shapes.

    if return_attn:
        out, attn = pl.pallas_call(
            _dattn_kernel_out_attn,
            out_shape=(
                jax.ShapeDtypeStruct((Npad, C), jnp.float32),
                jax.ShapeDtypeStruct((Npad, L), jnp.float32),
            ),
            grid_spec=pltpu.PrefetchScalarGridSpec(
                num_scalar_prefetch=0,
                grid=(n_blocks,),
                in_specs=in_specs,
                out_specs=[
                    pl.BlockSpec((NB, C), lambda b: (b, 0)),
                    pl.BlockSpec((NB, L), lambda b: (b, 0)),
                ],
            ),
            compiler_params=compiler_params,
            cost_estimate=cost,
        )(x_in, w1_in, w2_in)
        return out[:N], attn[:N]

    out = pl.pallas_call(
        _dattn_kernel_out,
        out_shape=jax.ShapeDtypeStruct((Npad, C), jnp.float32),
        grid_spec=pltpu.PrefetchScalarGridSpec(
            num_scalar_prefetch=0,
            grid=(n_blocks,),
            in_specs=in_specs,
            out_specs=pl.BlockSpec((NB, C), lambda b: (b, 0)),
        ),
        compiler_params=compiler_params,
        cost_estimate=cost,
    )(x_in, w1_in, w2_in)
    return out[:N]


# --------------------------------------------------------------------------------------
# Plain-JAX glue + reference
# --------------------------------------------------------------------------------------
def masking(x, ids_shuffle, len_keep):
    """Plain-JAX equivalent of DAttention.masking (gather; no Pallas hot path needed)."""
    N, L, D = x.shape
    ids_restore = jnp.argsort(ids_shuffle, axis=1)
    ids_keep = ids_shuffle[:, :len_keep]
    x_masked = jnp.take_along_axis(x, ids_keep[:, :, None], axis=1)
    mask = jnp.ones((N, L), dtype=x.dtype).at[:, :len_keep].set(0.0)
    mask = jnp.take_along_axis(mask, ids_restore, axis=1)
    return x_masked, mask, ids_restore


def _reference_forward(x, w1, w2, mxu_dtype=jnp.bfloat16):
    """Pure-JAX reference (gated=False, relu, no bias) on the same bf16-rounded operands."""
    xq = x.astype(mxu_dtype).astype(jnp.float32)
    w1q = w1.astype(mxu_dtype).astype(jnp.float32)
    h = jnp.maximum(jnp.einsum("nlc,cd->nld", xq, w1q), 0.0)   # Linear(C->128) + ReLU
    A = jnp.einsum("nld,kd->nlk", h, w2)                       # Linear(128->1)
    A = jnp.swapaxes(A, -1, -2)                                # [N, 1, L]
    A = jax.nn.softmax(A, axis=-1)
    out = jnp.einsum("nkl,nlc->nkc", A, xq)                    # [N, 1, C]
    return out[:, 0, :], A[:, 0, :]


# TODO(synk): gated=True (AttentionGated) variant and training-mode Dropout(0.25) are not
# implemented; only the default gated=False, dropout=False eval path is covered.

if __name__ == "__main__":
    key = jax.random.PRNGKey(0)
    Dh = 128  # hidden attention dim is fixed by the module (self.D = 128)

    def run_case(N, L, C):
        kx, k1, k2 = jax.random.split(jax.random.fold_in(key, N * 1000 + L), 3)
        x = jax.random.normal(kx, (N, L, C), dtype=jnp.float32)
        w1 = jax.random.normal(k1, (C, Dh), dtype=jnp.float32) * (1.0 / jnp.sqrt(C))
        w2 = jax.random.normal(k2, (1, Dh), dtype=jnp.float32) * (1.0 / jnp.sqrt(Dh))

        out, attn = dattention_forward(x, w1, w2, return_attn=True)
        out_only = dattention_forward(x, w1, w2, return_attn=False)
        out = jax.block_until_ready(out)
        attn = jax.block_until_ready(attn)
        out_only = jax.block_until_ready(out_only)

        ref_out, ref_attn = _reference_forward(x, w1, w2)
        assert out.shape == (N, C) and attn.shape == (N, L)
        assert jnp.allclose(out, ref_out, atol=5e-3, rtol=5e-3), "out mismatch"
        assert jnp.allclose(attn, ref_attn, atol=5e-3, rtol=5e-3), "attn mismatch"
        assert jnp.allclose(out_only, out, atol=1e-6, rtol=1e-6), "out-only path mismatch"
        assert jnp.allclose(jnp.sum(attn, axis=-1), 1.0, atol=5e-3), "softmax not normalized"

    run_case(N=4, L=8, C=32)     # tiny batch: NB == N (full-dim block) path
    run_case(N=19, L=16, C=64)   # NB = 8, padded-batch path (N not a multiple of NB)

    print("KERNEL_OK")
</pallas_src>

<mosaic_0001>
module attributes {stable_mosaic.version = 11 : i64} {
  func.func @_dattn_kernel_out_attn(%arg0: i32, %arg1: memref<4x8x32xbf16, #tpu.memory_space<vmem>>, %arg2: memref<32x128xbf16, #tpu.memory_space<vmem>>, %arg3: memref<1x128xf32, #tpu.memory_space<vmem>>, %arg4: memref<4x32xf32, #tpu.memory_space<vmem>>, %arg5: memref<4x8xf32, #tpu.memory_space<vmem>>) attributes {dimension_semantics = [#tpu.dimension_semantics<parallel>], iteration_bounds = array<i64: 1>, scalar_prefetch = 0 : i64, scratch_operands = 0 : i64, tpu.core_type = #tpu.core_type<tc>, window_params = [{transform_indices = @transform_0, window_bounds = array<i64: 4, 8, 32>}, {pipeline_mode = #tpu.pipeline_mode<synchronous>, transform_indices = @transform_1, window_bounds = array<i64: 32, 128>}, {pipeline_mode = #tpu.pipeline_mode<synchronous>, transform_indices = @transform_2, window_bounds = array<i64: 1, 128>}, {transform_indices = @transform_3, window_bounds = array<i64: 4, 32>}, {transform_indices = @transform_4, window_bounds = array<i64: 4, 8>}]} {
    %c0 = arith.constant 0 : index
    %c0_0 = arith.constant 0 : index
    %c0_1 = arith.constant 0 : index
    %0 = vector.load %arg1[%c0, %c0_0, %c0_1] : memref<4x8x32xbf16, #tpu.memory_space<vmem>>, vector<4x8x32xbf16>
    %1 = arith.extf %0 : vector<4x8x32xbf16> to vector<4x8x32xf32>
    %2 = vector.shape_cast %0 : vector<4x8x32xbf16> to vector<32x32xbf16>
    %c0_2 = arith.constant 0 : index
    %c0_3 = arith.constant 0 : index
    %3 = vector.load %arg2[%c0_2, %c0_3] : memref<32x128xbf16, #tpu.memory_space<vmem>>, vector<32x128xbf16>
    %cst = arith.constant dense<0.000000e+00> : vector<32x128xf32>
    %4 = tpu.matmul %2, %3, %cst {dimension_numbers = #tpu.dot_dimension_numbers<[1], [0], [0], [1], [0, 0, 1, 1], [], []>} : vector<32x32xbf16>, vector<32x128xbf16>, vector<32x128xf32> -> vector<32x128xf32>
    %cst_4 = arith.constant 0.000000e+00 : f32
    %5 = vector.broadcast %cst_4 : f32 to vector<32x128xf32>
    %6 = arith.maximumf %4, %5 : vector<32x128xf32>
    %7 = vector.shape_cast %6 : vector<32x128xf32> to vector<4x8x128xf32>
    %c0_5 = arith.constant 0 : index
    %c0_6 = arith.constant 0 : index
    %8 = vector.load %arg3[%c0_5, %c0_6] : memref<1x128xf32, #tpu.memory_space<vmem>>, vector<1x128xf32>
    %9 = vector.shape_cast %8 : vector<1x128xf32> to vector<1x1x128xf32>
    %10 = vector.broadcast %9 : vector<1x1x128xf32> to vector<4x8x128xf32>
    %11 = arith.mulf %7, %10 : vector<4x8x128xf32>
    %cst_7 = arith.constant dense<0.000000e+00> : vector<4x8xf32>
    %12 = vector.multi_reduction <add>, %11, %cst_7 [2] : vector<4x8x128xf32> to vector<4x8xf32>
    %cst_8 = arith.constant dense<0xFF800000> : vector<4xf32>
    %13 = vector.multi_reduction <maximumf>, %12, %cst_8 [1] : vector<4x8xf32> to vector<4xf32>
    %14 = vector.shape_cast %13 : vector<4xf32> to vector<4x1xf32>
    %15 = vector.broadcast %14 : vector<4x1xf32> to vector<4x8xf32>
    %16 = arith.subf %12, %15 : vector<4x8xf32>
    %17 = math.exp %16 : vector<4x8xf32>
    %cst_9 = arith.constant dense<0.000000e+00> : vector<4xf32>
    %18 = vector.multi_reduction <add>, %17, %cst_9 [1] : vector<4x8xf32> to vector<4xf32>
    %19 = vector.shape_cast %18 : vector<4xf32> to vector<4x1xf32>
    %20 = tpu.reciprocal %19 {approx = true} : vector<4x1xf32> -> vector<4x1xf32>
    %21 = vector.broadcast %20 : vector<4x1xf32> to vector<4x8xf32>
    %22 = arith.mulf %17, %21 : vector<4x8xf32>
    %23 = vector.shape_cast %22 : vector<4x8xf32> to vector<4x8x1xf32>
    %24 = vector.broadcast %23 : vector<4x8x1xf32> to vector<4x8x32xf32>
    %25 = arith.mulf %24, %1 : vector<4x8x32xf32>
    %cst_10 = arith.constant dense<0.000000e+00> : vector<4x32xf32>
    %26 = vector.multi_reduction <add>, %25, %cst_10 [1] : vector<4x8x32xf32> to vector<4x32xf32>
    %c0_11 = arith.constant 0 : index
    %c0_12 = arith.constant 0 : index
    %27 = vector.load %arg4[%c0_11, %c0_12] : memref<4x32xf32, #tpu.memory_space<vmem>>, vector<4x32xf32>
    tpu.vector_store %arg4[%c0_11, %c0_12], %26 {strides = array<i32>} : memref<4x32xf32, #tpu.memory_space<vmem>>, vector<4x32xf32>,
    %c0_13 = arith.constant 0 : index
    %c0_14 = arith.constant 0 : index
    %28 = vector.load %arg5[%c0_13, %c0_14] : memref<4x8xf32, #tpu.memory_space<vmem>>, vector<4x8xf32>
    tpu.vector_store %arg5[%c0_13, %c0_14], %22 {strides = array<i32>} : memref<4x8xf32, #tpu.memory_space<vmem>>, vector<4x8xf32>,
    return
  }
  func.func @transform_0(%arg0: i32) -> (i32, i32, i32) {
    %c0_i32 = arith.constant 0 : i32
    %c0_i32_0 = arith.constant 0 : i32
    %c0_i32_1 = arith.constant 0 : i32
    return %arg0, %c0_i32, %c0_i32_0 : i32, i32, i32
  }
  func.func @transform_1(%arg0: i32) -> (i32, i32) {
    %c0_i32 = arith.constant 0 : i32
    %c0_i32_0 = arith.constant 0 : i32
    %c0_i32_1 = arith.constant 0 : i32
    return %c0_i32, %c0_i32_0 : i32, i32
  }
  func.func @transform_2(%arg0: i32) -> (i32, i32) {
    %c0_i32 = arith.constant 0 : i32
    %c0_i32_0 = arith.constant 0 : i32
    %c0_i32_1 = arith.constant 0 : i32
    return %c0_i32, %c0_i32_0 : i32, i32
  }
  func.func @transform_3(%arg0: i32) -> (i32, i32) {
    %c0_i32 = arith.constant 0 : i32
    %c0_i32_0 = arith.constant 0 : i32
    return %arg0, %c0_i32 : i32, i32
  }
  func.func @transform_4(%arg0: i32) -> (i32, i32) {
    %c0_i32 = arith.constant 0 : i32
    %c0_i32_0 = arith.constant 0 : i32
    return %arg0, %c0_i32 : i32, i32
  }
}

</mosaic_0001>

<llo_original>
// kernel: dattention_forward.1
$region0: #{dattention_forward.1}
  #allocation0 [shape = 'u32[]', space=smem, size = 0x4, offset = 0x4, fixed_abs, tag = 'smem constant byte address 0x4 - core index']
  #allocation1 [shape = 'u32[144,128]{1,0:T(1,128)}', space=vmem, size = 0x12000, scoped, tag = 'internal scratch']
  %s0 = inlined_call_operand.vmem [shape: bf16[4,8,32], index: 0, kind: input, shape index: {}]
  %s1 = inlined_call_operand.vmem [shape: bf16[32,128], index: 1, kind: input, shape index: {}]
  %s2 = inlined_call_operand.vmem [shape: f32[1,128], index: 2, kind: input, shape index: {}]
  %s3 = inlined_call_operand.hbm [shape: f32[4,32], index: 3, kind: output, shape index: {0}]
  %s4 = inlined_call_operand.hbm [shape: f32[4,8], index: 4, kind: output, shape index: {1}]
  %5 = xla_tuple %s3, %s4
  %s6 = sld [smem:[#allocation0]]
  $region30: #{dattention_forward.1} parent=0
    _
  %s8 = ssub.s32 1, %s6
  %s9 = scalar_select 0, %s8, %s6
  $region1: #{dattention_forward.1} parent=0
    #allocation2 [shape = 'u8[2048]{0}', space=vmem, size = 0x800, scoped, tag = 'output window, operand 0, single buffered']
    #allocation3 [shape = 's32[1]{0}', space=sflag, size = 0x4, scoped, tag = 'scoped memory for dattention_forward.1']
    #allocation4 [shape = 'u8[2048]{0}', space=vmem, size = 0x800, scoped, tag = 'output window, operand 1, single buffered']
    #allocation5 [shape = 's32[1]{0}', space=sflag, size = 0x4, scoped, tag = 'scoped memory for dattention_forward.1']
    %10 = vsyncpa [#allocation3], 0
    %11 = vsyncpa [#allocation5], 0
    // Predicated region
    $region2: #{dattention_forward.1} parent=1 // pred_check
      _
    $region3: #{dattention_forward.1} parent=1 // pred_check_branch
      %13 = sbr.rel (0) target = $region5
    $region4: #{dattention_forward.1} parent=1 // pred_region
      _
    $region5: #{dattention_forward.1} parent=1 // pred_fallthru
      _
    // Predicated region
    $region6: #{dattention_forward.1} parent=1 // pred_check
      _
    $region7: #{dattention_forward.1} parent=1 // pred_check_branch
      %15 = sbr.rel (0) target = $region9
    $region8: #{dattention_forward.1} parent=1 // pred_region
      _
    $region9: #{dattention_forward.1} parent=1 // pred_fallthru
      _
    // Predicated region
    $region10: #{dattention_forward.1} parent=1 // pred_check
      _
    $region11: #{dattention_forward.1} parent=1 // pred_check_branch
      %17 = sbr.rel (0) target = $region13
    $region12: #{dattention_forward.1} parent=1 // pred_region
      _
    $region13: #{dattention_forward.1} parent=1 // pred_fallthru
      _
    %v19 = vld [vmem:[%s0] sm:$0xf]
    %v20 = vld [vmem:[%s0 + $0x4] sm:$0xf]
    %v21 = vld [vmem:[%s0 + $0x8] sm:$0xf]
    %v22 = vld [vmem:[%s0 + $0xc] sm:$0xf]
    %v23 = vunpack.c.l.bf16 %v19
    %v24 = vunpack.c.l.bf16 %v20
    %v25 = vunpack.c.l.bf16 %v21
    %v26 = vunpack.c.l.bf16 %v22
    %v27 = vld [vmem:[%s1] sm:$0xf]
    %v28 = vld [vmem:[%s1 + $0x4] sm:$0xf]
    %v29 = vld [vmem:[%s1 + $0x8] sm:$0xf]
    %v30 = vld [vmem:[%s1 + $0xc] sm:$0xf]
    %v35 = vunpack.c.l.b16 %v19
    %v36 = vunpack.c.l.b16 %v20
    %v37 = vunpack.c.l.b16 %v21
    %v38 = vunpack.c.l.b16 %v22
    %v39 = vpack.c.b16 %v36, %v35
    %v40 = vpack.c.b16 %v38, %v37
    %v45 = vunpack.c.l.b16 %v27
    %v46 = vunpack.c.l.b16 %v28
    %v47 = vunpack.c.l.b16 %v29
    %v48 = vunpack.c.l.b16 %v30
    %v49 = vpack.c.b16 %v46, %v45
    %v50 = vpack.c.b16 %v48, %v47
    %vm53 = vcmask 261120
    %v55 = vsel %vm53, %v39, 0
    %v58 = vsel %vm53, %v40, 0
    %60 = vmatprep.subr.bf16.mxu0 0
    %61 = vmatpush1.bf16.msra.mxu0 %v49
    %62 = vmatprep.subr.bf16.mxu0 0
    %63 = vmatpush1.bf16.msra.mxu0 %v50
    %64 = vmatprep.subr.bf16.mxu0 0
    %65 = vmatpush1.bf16.msra.mxu0 0
    %66 = vmatprep.subr.bf16.mxu0 0
    %67 = vmatpush1.bf16.msra.mxu0 0
    %68 = vmatprep.subr.bf16.mxu0 0
    %69 = vmatpush1.bf16.msra.mxu0 0
    %70 = vmatprep.subr.bf16.mxu0 0
    %71 = vmatpush1.bf16.msra.mxu0 0
    %72 = vmatprep.subr.bf16.mxu0 0
    %73 = vmatpush1.bf16.msra.mxu0 0
    %74 = vmatprep.subr.bf16.mxu0 0
    %75 = vmatpush1.bf16.msra.mxu0 0
    %76 = vmatprep.subr.bf16.mxu0 0
    %77 = vmatpush1.bf16.msra.mxu0 0
    %78 = vmatprep.subr.bf16.mxu0 0
    %79 = vmatpush1.bf16.msra.mxu0 0
    %80 = vmatprep.subr.bf16.mxu0 0
    %81 = vmatpush1.bf16.msra.mxu0 0
    %82 = vmatprep.subr.bf16.mxu0 0
    %83 = vmatpush1.bf16.msra.mxu0 0
    %84 = vmatprep.subr.bf16.mxu0 0
    %85 = vmatpush1.bf16.msra.mxu0 0
    %86 = vmatprep.subr.bf16.mxu0 0
    %87 = vmatpush1.bf16.msra.mxu0 0
    %88 = vmatprep.subr.bf16.mxu0 0
    %89 = vmatpush1.bf16.msra.mxu0 0
    %90 = vmatprep.subr.bf16.mxu0 0
    %91 = vmatpush1.bf16.msra.mxu0 0
    %92 = vmatprep.mubr.bf16.mxu0 0
    %93 = vmatmul.mubr.bf16.gmra.mrb[0].mxu0 %v55
    %v94 = vpop.f32.mrb[0].mxu0
    %v95 = vadd.f32 0.0, %v94
    %v96 = vpop.f32.mrb[0].mxu0
    %v97 = vpop.f32.mrb[0].mxu0
    %v98 = vadd.f32 0.0, %v97
    %v99 = vpop.f32.mrb[0].mxu0
    %100 = vmatprep.mubr.bf16.mxu0 0
    %101 = vmatmul.mubr.bf16.gmra.mrb[0].mxu0 %v58
    %v102 = vpop.f32.mrb[0].mxu0
    %v103 = vadd.f32 0.0, %v102
    %v104 = vpop.f32.mrb[0].mxu0
    %v105 = vpop.f32.mrb[0].mxu0
    %v106 = vadd.f32 0.0, %v105
    %v107 = vpop.f32.mrb[0].mxu0
    %108 = vdwg.mxu0
    %v109 = vmax.f32 %v95, 0.0
    %v110 = vmax.f32 %v98, 0.0
    %v111 = vmax.f32 %v103, 0.0
    %v112 = vmax.f32 %v106, 0.0
    %v113 = vld [vmem:[%s2] sm:$0x1]
    %v115 = vlaneseq
    %v116 = vshrl.u32 %v115, 7
    %v117 = vsub.s32 0, %v116
    %v118 = vrot.slane %v113, %v117
    %v120 = vmul.f32 %v109, %v118
    %v121 = vmul.f32 %v110, %v118
    %v122 = vmul.f32 %v111, %v118
    %v123 = vmul.f32 %v112, %v118
    %124 = vadd.xlane.f32.xlu0 %v120
    %v125 = vpop.xlane.xlu0 %124
    %126 = vadd.xlane.f32.xlu0 %v121
    %v127 = vpop.xlane.xlu0 %126
    %128 = vadd.xlane.f32.xlu0 %v122
    %v129 = vpop.xlane.xlu0 %128
    %130 = vadd.xlane.f32.xlu0 %v123
    %v131 = vpop.xlane.xlu0 %130
    %v136 = vlaneseq
    %v137 = vand.u32 %v136, 127
    %v138 = vlaneseq
    %v139 = vshrl.u32 %v138, 7
    %v140 = vsub.s32 %v137, %v139
    %v141 = vrot.slane %v125, %v140
    %v142 = vlaneseq
    %v143 = vshrl.u32 %v142, 7
    %v144 = vsub.s32 %v137, %v143
    %v145 = vrot.slane %v127, %v144
    %v146 = vlaneseq
    %v147 = vshrl.u32 %v146, 7
    %v148 = vsub.s32 %v137, %v147
    %v149 = vrot.slane %v129, %v148
    %v150 = vlaneseq
    %v151 = vshrl.u32 %v150, 7
    %v152 = vsub.s32 %v137, %v151
    %v153 = vrot.slane %v131, %v152
    %vm154 = vcmask 1041409
    %v155 = vsel %vm154, %v145, %v141
    %vm156 = vcmask 1042434
    %v157 = vsel %vm156, %v149, %v155
    %vm158 = vcmask 1043459
    %v159 = vsel %vm158, %v153, %v157
    %vm161 = vcmask 60416
    %v162 = vsel %vm161, %v159, -inf
    %163 = vmax.xlane.f32.xlu0 %v162
    %v164 = vpop.xlane.xlu0 %163
    %v166 = vlaneseq
    %v167 = vshrl.u32 %v166, 7
    %v168 = vsub.s32 0, %v167
    %v169 = vrot.slane %v164, %v168
    %v170 = vlaneseq
    %v171 = vshrl.u32 %v170, 7
    %v172 = vsub.s32 1, %v171
    %v173 = vrot.slane %v164, %v172
    %v174 = vlaneseq
    %v175 = vshrl.u32 %v174, 7
    %v176 = vsub.s32 2, %v175
    %v177 = vrot.slane %v164, %v176
    %v178 = vlaneseq
    %v179 = vshrl.u32 %v178, 7
    %v180 = vsub.s32 3, %v179
    %v181 = vrot.slane %v164, %v180
    %v186 = vsub.f32 %v125, %v169
    %v187 = vsub.f32 %v127, %v173
    %v188 = vsub.f32 %v129, %v177
    %v189 = vsub.f32 %v131, %v181
    %v190 = vmul.f32 %v186, 1.442695
    %v191 = vpow.pop %v190
    %v192 = vmul.f32 %v187, 1.442695
    %v193 = vpow.pop %v192
    %v194 = vmul.f32 %v188, 1.442695
    %v195 = vpow.pop %v194
    %v196 = vmul.f32 %v189, 1.442695
    %v197 = vpow.pop %v196
    %202 = vset.pattern.permute.xlu0 0
    %203 = vperm.xlu0 %202, %v191
    %v204 = vpop.permute.xlu0 %203
    %205 = vset.pattern.permute.xlu0 0
    %206 = vperm.xlu0 %205, %v193
    %v207 = vpop.permute.xlu0 %206
    %208 = vset.pattern.permute.xlu0 0
    %209 = vperm.xlu0 %208, %v195
    %v210 = vpop.permute.xlu0 %209
    %211 = vset.pattern.permute.xlu0 0
    %212 = vperm.xlu0 %211, %v197
    %v213 = vpop.permute.xlu0 %212
    %v214 = vlaneseq
    %v215 = vshrl.u32 %v214, 7
    %v216 = vsub.s32 %v137, %v215
    %v217 = vrot.slane %v204, %v216
    %v218 = vlaneseq
    %v219 = vshrl.u32 %v218, 7
    %v220 = vsub.s32 %v137, %v219
    %v221 = vrot.slane %v207, %v220
    %v222 = vlaneseq
    %v223 = vshrl.u32 %v222, 7
    %v224 = vsub.s32 %v137, %v223
    %v225 = vrot.slane %v210, %v224
    %v226 = vlaneseq
    %v227 = vshrl.u32 %v226, 7
    %v228 = vsub.s32 %v137, %v227
    %v229 = vrot.slane %v213, %v228
    %v230 = vsel %vm154, %v221, %v217
    %v231 = vsel %vm156, %v225, %v230
    %v232 = vsel %vm158, %v229, %v231
    %v234 = vsel %vm161, %v232, 0.0
    %235 = vadd.xlane.f32.xlu0 %v234
    %v236 = vpop.xlane.xlu0 %235
    %v237 = vrcp.pop %v236
    %v239 = vlaneseq
    %v240 = vshrl.u32 %v239, 7
    %v241 = vsub.s32 0, %v240
    %v242 = vrot.slane %v237, %v241
    %v243 = vlaneseq
    %v244 = vshrl.u32 %v243, 7
    %v245 = vsub.s32 1, %v244
    %v246 = vrot.slane %v237, %v245
    %v247 = vlaneseq
    %v248 = vshrl.u32 %v247, 7
    %v249 = vsub.s32 2, %v248
    %v250 = vrot.slane %v237, %v249
    %v251 = vlaneseq
    %v252 = vshrl.u32 %v251, 7
    %v253 = vsub.s32 3, %v252
    %v254 = vrot.slane %v237, %v253
    %v259 = vmul.f32 %v191, %v242
    %v260 = vmul.f32 %v193, %v246
    %v261 = vmul.f32 %v195, %v250
    %v262 = vmul.f32 %v197, %v254
    %264 = vset.pattern.permute.xlu0 0
    %265 = vperm.xlu0 %264, %v259
    %v266 = vpop.permute.xlu0 %265
    %269 = vset.pattern.permute.xlu0 0
    %270 = vperm.xlu0 %269, %v260
    %v271 = vpop.permute.xlu0 %270
    %274 = vset.pattern.permute.xlu0 0
    %275 = vperm.xlu0 %274, %v261
    %v276 = vpop.permute.xlu0 %275
    %279 = vset.pattern.permute.xlu0 0
    %280 = vperm.xlu0 %279, %v262
    %v281 = vpop.permute.xlu0 %280
    %v283 = vmul.f32 %v266, %v23
    %v284 = vmul.f32 %v271, %v24
    %v285 = vmul.f32 %v276, %v25
    %v286 = vmul.f32 %v281, %v26
    %v287 = vsel %vm53, %v283, 0.0
    %v288 = vrot.slane %v287, 4
    %v289 = vadd.f32 %v287, %v288
    %v290 = vrot.slane %v289, 2
    %v291 = vadd.f32 %v289, %v290
    %v292 = vrot.slane %v291, 1
    %v293 = vadd.f32 %v291, %v292
    %v294 = vsel %vm53, %v284, 0.0
    %v295 = vrot.slane %v294, 4
    %v296 = vadd.f32 %v294, %v295
    %v297 = vrot.slane %v296, 2
    %v298 = vadd.f32 %v296, %v297
    %v299 = vrot.slane %v298, 1
    %v300 = vadd.f32 %v298, %v299
    %v301 = vsel %vm53, %v285, 0.0
    %v302 = vrot.slane %v301, 4
    %v303 = vadd.f32 %v301, %v302
    %v304 = vrot.slane %v303, 2
    %v305 = vadd.f32 %v303, %v304
    %v306 = vrot.slane %v305, 1
    %v307 = vadd.f32 %v305, %v306
    %v308 = vsel %vm53, %v286, 0.0
    %v309 = vrot.slane %v308, 4
    %v310 = vadd.f32 %v308, %v309
    %v311 = vrot.slane %v310, 2
    %v312 = vadd.f32 %v310, %v311
    %v313 = vrot.slane %v312, 1
    %v314 = vadd.f32 %v312, %v313
    %v319 = vsel %vm154, %v300, %v293
    %v320 = vsel %vm156, %v307, %v319
    %v321 = vsel %vm158, %v314, %v320
    %vm323 = vcmask 257024
    %324 = vst.msk [vmem:[#allocation2] sm:$0xf] %vm323, %v321
    %v325 = vlaneseq
    %v326 = vshrl.u32 %v325, 7
    %v327 = vsub.s32 %v137, %v326
    %v328 = vrot.slane %v266, %v327
    %v329 = vlaneseq
    %v330 = vshrl.u32 %v329, 7
    %v331 = vsub.s32 %v137, %v330
    %v332 = vrot.slane %v271, %v331
    %v333 = vlaneseq
    %v334 = vshrl.u32 %v333, 7
    %v335 = vsub.s32 %v137, %v334
    %v336 = vrot.slane %v276, %v335
    %v337 = vlaneseq
    %v338 = vshrl.u32 %v337, 7
    %v339 = vsub.s32 %v137, %v338
    %v340 = vrot.slane %v281, %v339
    %v341 = vsel %vm154, %v332, %v328
    %v342 = vsel %vm156, %v336, %v341
    %v343 = vsel %vm158, %v340, %v342
    %345 = vst.msk [vmem:[#allocation4] sm:$0xf] %vm161, %v343
    // Predicated region
    $region14: #{dattention_forward.1} parent=1 // pred_check
      _
    $region15: #{dattention_forward.1} parent=1 // pred_check_branch
      %347 = sbr.rel (0) target = $region17
    $region16: #{dattention_forward.1} parent=1 // pred_region
      %s349 = ssub.s32 64, 64
      %350 = vsyncadd [#allocation3], %s349
      %s352 = sshll.u32 [#allocation2], 4
      %s353 = int_to_ptr.vmem [resolvable:$true] %s352
      %355 = dma.vmem_to_hbm [thread:$0]  %s353, 64, %s3, [#allocation3]
    $region17: #{dattention_forward.1} parent=1 // pred_fallthru
      _
    // Predicated region
    $region18: #{dattention_forward.1} parent=1 // pred_check
      _
    $region19: #{dattention_forward.1} parent=1 // pred_check_branch
      %357 = sbr.rel (0) target = $region21
    $region20: #{dattention_forward.1} parent=1 // pred_region
      %s359 = ssub.s32 64, 64
      %360 = vsyncadd [#allocation5], %s359
      %s362 = sshll.u32 [#allocation4], 4
      %s363 = int_to_ptr.vmem [resolvable:$true] %s362
      %365 = dma.vmem_to_hbm [thread:$0]  %s363, 64, %s4, [#allocation5]
    $region21: #{dattention_forward.1} parent=1 // pred_fallthru
      _
    // Predicated region
    $region22: #{dattention_forward.1} parent=1 // pred_check
      _
    $region23: #{dattention_forward.1} parent=1 // pred_check_branch
      %367 = sbr.rel (0) target = $region25
    $region24: #{dattention_forward.1} parent=1 // pred_region
      %368 = dma.done [#allocation3], 64
    $region25: #{dattention_forward.1} parent=1 // pred_fallthru
      _
    // Predicated region
    $region26: #{dattention_forward.1} parent=1 // pred_check
      _
    $region27: #{dattention_forward.1} parent=1 // pred_check_branch
      %370 = sbr.rel (0) target = $region29
    $region28: #{dattention_forward.1} parent=1 // pred_region
      %371 = dma.done [#allocation5], 64
    $region29: #{dattention_forward.1} parent=1 // pred_fallthru
      _
    %372 = vsyncpa [#allocation3], 1
    %373 = vsyncpa [#allocation5], 1

</llo_original>
